<compile_context>
chip_gen: v5e
topology: v5e:2x2
jax: 0.10.0
libtpu: 0.0.40
codegen_flags: <defaults>
</compile_context>

<pallas_src>
import functools

import jax
import jax.numpy as jnp
from jax.experimental import pallas as pl
from jax.experimental.pallas import tpu as pltpu


def _gmsd_quality_kernel(x1_ref, x2_ref, o_ref, *, H, W, T_folded):
    # One block = (Bc, H*W): Bc channels, each image flattened on the lane axis.
    Bc, HW = o_ref.shape
    lane = jax.lax.broadcasted_iota(jnp.int32, (Bc, HW), 1)   # flat index h*W + w
    if (W & (W - 1)) == 0:
        w_idx = lane & (W - 1)                                # w = lane % W (pow2 fast path)
    else:
        w_idx = lane % W
    top = lane < W                       # h == 0
    bot = lane >= (H - 1) * W            # h == H-1
    lft = w_idx == 0                     # w == 0
    rgt = w_idx == W - 1                 # w == W-1

    def rolled_pair(v, step):
        # prev[f] = v[f - step], nxt[f] = v[f + step]  (both wrap mod H*W; jnp.roll semantics)
        prev = pltpu.roll(v, shift=step, axis=1)
        nxt = pltpu.roll(v, shift=HW - step, axis=1)
        return prev, nxt

    def grad_sq(x_ref):
        x = x_ref[...].astype(jnp.float32)
        up_r, dn_r = rolled_pair(x, W)            # (h-1, w) / (h+1, w), wrapping
        x_up = jnp.where(top, dn_r, up_r)         # ReflectionPad: row -1 -> row 1
        x_dn = jnp.where(bot, up_r, dn_r)         # ReflectionPad: row H -> row H-2
        vsum = x_up + x + x_dn                    # vertical [1, 1, 1]
        vdif = x_up - x_dn                        # vertical [1, 0, -1]
        vs_p, vs_n = rolled_pair(vsum, 1)         # (h, w-1) / (h, w+1), wrapping
        vd_p, vd_n = rolled_pair(vdif, 1)
        vs_l = jnp.where(lft, vs_n, vs_p)         # ReflectionPad: col -1 -> col 1
        vs_r = jnp.where(rgt, vs_p, vs_n)         # ReflectionPad: col W -> col W-2
        vd_l = jnp.where(lft, vd_n, vd_p)
        vd_r = jnp.where(rgt, vd_p, vd_n)
        gx = vs_l - vs_r                          # 3 * Prewitt_x(img)
        gy = vd_l + vdif + vd_r                   # 3 * Prewitt_y(img)
        return gx * gx + gy * gy                  # unscaled squared gradient magnitude

    u1 = grad_sq(x1_ref)
    u2 = grad_sq(x2_ref)
    # gm_i = (255/(3*rgb_scale)) * sqrt(u_i); all constant scales are folded into
    # T_folded = T * (3*rgb_scale/255)^2, leaving a single sqrt and no rescaling.
    q = 1.0 - (2.0 * jnp.sqrt(u1 * u2) + T_folded) / (u1 + u2 + T_folded)
    o_ref[...] = q.astype(o_ref.dtype)


def _pick_channels_per_block(B, HW, budget_bytes=4 << 20):
    """Largest channel batch Bc (divisor of B) whose f32 block fits the budget.

    Bc must be either B (block covers the whole array) or a multiple of 8
    (sublane-aligned block rows) to satisfy the (8, 128) tiling rule.
    """
    if B * HW * 4 <= budget_bytes:
        return B
    best = None
    for bc in range(8, B, 8):
        if B % bc == 0 and bc * HW * 4 <= budget_bytes:
            best = bc
    # TODO(synk): row/lane band tiling with a halo once a single channel
    # exceeds the VMEM budget (1080p/4K images, especially on v7x).
    return best if best is not None else B


def gmsd_quality(img1, img2, *, rgb_scale=1.0, T=170.0, channels_per_block=None):
    """Fused GMSD_quality forward. img1, img2: (N, C, H, W), same shape/dtype."""
    assert img1.shape == img2.shape
    N, C, H, W = img1.shape
    assert H >= 2 and W >= 2, "ReflectionPad2d(1) requires H, W >= 2"
    B, HW = N * C, H * W
    x1 = img1.reshape(B, HW)   # free reshape: whole channel on the lane axis
    x2 = img2.reshape(B, HW)

    Bc = channels_per_block or _pick_channels_per_block(B, HW)
    assert B % Bc == 0 and (Bc == B or Bc % 8 == 0)

    t_folded = float(T) * (3.0 * float(rgb_scale) / 255.0) ** 2
    kernel = functools.partial(_gmsd_quality_kernel, H=H, W=W, T_folded=t_folded)

    out = pl.pallas_call(
        kernel,
        out_shape=jax.ShapeDtypeStruct((B, HW), img1.dtype),
        grid_spec=pltpu.PrefetchScalarGridSpec(
            num_scalar_prefetch=0,
            grid=(B // Bc,),
            in_specs=[
                pl.BlockSpec((Bc, HW), lambda g: (g, 0)),
                pl.BlockSpec((Bc, HW), lambda g: (g, 0)),
            ],
            out_specs=pl.BlockSpec((Bc, HW), lambda g: (g, 0)),
        ),
        compiler_params=pltpu.CompilerParams(
            dimension_semantics=("parallel",)),
    )(x1, x2)
    return out.reshape(N, C, H, W)


def _reference_gmsd_quality(img1, img2, rgb_scale=1.0, T=170.0):
    # Pure-JAX reference mirroring the exact PyTorch op chain.
    def prewitt(img, mode):
        if mode == "x":
            k = jnp.array([[1., 0., -1.], [1., 0., -1.], [1., 0., -1.]],
                          jnp.float32) / 3.0
        else:
            k = jnp.array([[1., 1., 1.], [0., 0., 0.], [-1., -1., -1.]],
                          jnp.float32) / 3.0
        xp = jnp.pad(img, ((0, 0), (0, 0), (1, 1), (1, 1)), mode="reflect")
        _, _, H, W = img.shape
        out = jnp.zeros_like(img)
        for ki in range(3):
            for kj in range(3):
                out = out + k[ki, kj] * xp[:, :, ki:ki + H, kj:kj + W]
        return out

    def gmsd(img):  # the inner GMSD module is built with rgb_scale=1
        px = prewitt(img * 255.0, "x")
        py = prewitt(img * 255.0, "y")
        return jnp.sqrt(px ** 2 + py ** 2) * (1.0 / 255.0)

    i1 = img1 * (255.0 / rgb_scale)
    i2 = img2 * (255.0 / rgb_scale)
    gm1 = gmsd(i1)
    gm2 = gmsd(i2)
    return 1.0 - (2.0 * gm1 * gm2 + T) / (gm1 ** 2 + gm2 ** 2 + T)


if __name__ == "__main__":
    key = jax.random.PRNGKey(0)
    k1, k2 = jax.random.split(key)
    N, C, H, W = 2, 3, 16, 16  # module fixes num_fea = 3 channels
    img1 = jax.random.uniform(k1, (N, C, H, W), dtype=jnp.float32)
    img2 = jax.random.uniform(k2, (N, C, H, W), dtype=jnp.float32)

    out = jax.block_until_ready(gmsd_quality(img1, img2))

    ref = _reference_gmsd_quality(img1, img2)
    assert out.shape == ref.shape == (N, C, H, W)
    err = float(jnp.max(jnp.abs(out - ref)))
    assert jnp.allclose(out, ref, atol=1e-5, rtol=1e-5), f"max abs err {err}"

    print("KERNEL_OK")
</pallas_src>

<mosaic_0001>
module attributes {stable_mosaic.version = 11 : i64} {
  func.func @_gmsd_quality_kernel(%arg0: i32, %arg1: memref<6x256xf32, #tpu.memory_space<vmem>>, %arg2: memref<6x256xf32, #tpu.memory_space<vmem>>, %arg3: memref<6x256xf32, #tpu.memory_space<vmem>>) attributes {dimension_semantics = [#tpu.dimension_semantics<parallel>], iteration_bounds = array<i64: 1>, scalar_prefetch = 0 : i64, scratch_operands = 0 : i64, tpu.core_type = #tpu.core_type<tc>, window_params = [{transform_indices = @transform_0, window_bounds = array<i64: 6, 256>}, {transform_indices = @transform_1, window_bounds = array<i64: 6, 256>}, {transform_indices = @transform_2, window_bounds = array<i64: 6, 256>}]} {
    %0 = tpu.iota {dimensions = array<i32: 1>} : vector<6x256xi32>
    %c15_i32 = arith.constant 15 : i32
    %1 = vector.broadcast %c15_i32 : i32 to vector<6x256xi32>
    %2 = arith.andi %0, %1 : vector<6x256xi32>
    %c16_i32 = arith.constant 16 : i32
    %3 = vector.broadcast %c16_i32 : i32 to vector<6x256xi32>
    %4 = arith.cmpi slt, %0, %3 : vector<6x256xi32>
    %c240_i32 = arith.constant 240 : i32
    %5 = vector.broadcast %c240_i32 : i32 to vector<6x256xi32>
    %6 = arith.cmpi sge, %0, %5 : vector<6x256xi32>
    %c0_i32 = arith.constant 0 : i32
    %7 = vector.broadcast %c0_i32 : i32 to vector<6x256xi32>
    %8 = arith.cmpi eq, %2, %7 : vector<6x256xi32>
    %c15_i32_0 = arith.constant 15 : i32
    %9 = vector.broadcast %c15_i32_0 : i32 to vector<6x256xi32>
    %10 = arith.cmpi eq, %2, %9 : vector<6x256xi32>
    %c0 = arith.constant 0 : index
    %c0_1 = arith.constant 0 : index
    %11 = vector.load %arg1[%c0, %c0_1] : memref<6x256xf32, #tpu.memory_space<vmem>>, vector<6x256xf32>
    %c16_i32_2 = arith.constant 16 : i32
    %12 = tpu.dynamic_rotate %11 by %c16_i32_2 dim 1 : vector<6x256xf32>, i32 -> vector<6x256xf32>
    %c240_i32_3 = arith.constant 240 : i32
    %13 = tpu.dynamic_rotate %11 by %c240_i32_3 dim 1 : vector<6x256xf32>, i32 -> vector<6x256xf32>
    %14 = arith.select %4, %13, %12 : vector<6x256xi1>, vector<6x256xf32>
    %15 = arith.select %6, %12, %13 : vector<6x256xi1>, vector<6x256xf32>
    %16 = arith.addf %14, %11 : vector<6x256xf32>
    %17 = arith.addf %16, %15 : vector<6x256xf32>
    %18 = arith.subf %14, %15 : vector<6x256xf32>
    %c1_i32 = arith.constant 1 : i32
    %19 = tpu.dynamic_rotate %17 by %c1_i32 dim 1 : vector<6x256xf32>, i32 -> vector<6x256xf32>
    %c255_i32 = arith.constant 255 : i32
    %20 = tpu.dynamic_rotate %17 by %c255_i32 dim 1 : vector<6x256xf32>, i32 -> vector<6x256xf32>
    %c1_i32_4 = arith.constant 1 : i32
    %21 = tpu.dynamic_rotate %18 by %c1_i32_4 dim 1 : vector<6x256xf32>, i32 -> vector<6x256xf32>
    %c255_i32_5 = arith.constant 255 : i32
    %22 = tpu.dynamic_rotate %18 by %c255_i32_5 dim 1 : vector<6x256xf32>, i32 -> vector<6x256xf32>
    %23 = arith.select %8, %20, %19 : vector<6x256xi1>, vector<6x256xf32>
    %24 = arith.select %10, %19, %20 : vector<6x256xi1>, vector<6x256xf32>
    %25 = arith.select %8, %22, %21 : vector<6x256xi1>, vector<6x256xf32>
    %26 = arith.select %10, %21, %22 : vector<6x256xi1>, vector<6x256xf32>
    %27 = arith.subf %23, %24 : vector<6x256xf32>
    %28 = arith.addf %25, %18 : vector<6x256xf32>
    %29 = arith.addf %28, %26 : vector<6x256xf32>
    %30 = arith.mulf %27, %27 : vector<6x256xf32>
    %31 = arith.mulf %29, %29 : vector<6x256xf32>
    %32 = arith.addf %30, %31 : vector<6x256xf32>
    %c0_6 = arith.constant 0 : index
    %c0_7 = arith.constant 0 : index
    %33 = vector.load %arg2[%c0_6, %c0_7] : memref<6x256xf32, #tpu.memory_space<vmem>>, vector<6x256xf32>
    %c16_i32_8 = arith.constant 16 : i32
    %34 = tpu.dynamic_rotate %33 by %c16_i32_8 dim 1 : vector<6x256xf32>, i32 -> vector<6x256xf32>
    %c240_i32_9 = arith.constant 240 : i32
    %35 = tpu.dynamic_rotate %33 by %c240_i32_9 dim 1 : vector<6x256xf32>, i32 -> vector<6x256xf32>
    %36 = arith.select %4, %35, %34 : vector<6x256xi1>, vector<6x256xf32>
    %37 = arith.select %6, %34, %35 : vector<6x256xi1>, vector<6x256xf32>
    %38 = arith.addf %36, %33 : vector<6x256xf32>
    %39 = arith.addf %38, %37 : vector<6x256xf32>
    %40 = arith.subf %36, %37 : vector<6x256xf32>
    %c1_i32_10 = arith.constant 1 : i32
    %41 = tpu.dynamic_rotate %39 by %c1_i32_10 dim 1 : vector<6x256xf32>, i32 -> vector<6x256xf32>
    %c255_i32_11 = arith.constant 255 : i32
    %42 = tpu.dynamic_rotate %39 by %c255_i32_11 dim 1 : vector<6x256xf32>, i32 -> vector<6x256xf32>
    %c1_i32_12 = arith.constant 1 : i32
    %43 = tpu.dynamic_rotate %40 by %c1_i32_12 dim 1 : vector<6x256xf32>, i32 -> vector<6x256xf32>
    %c255_i32_13 = arith.constant 255 : i32
    %44 = tpu.dynamic_rotate %40 by %c255_i32_13 dim 1 : vector<6x256xf32>, i32 -> vector<6x256xf32>
    %45 = arith.select %8, %42, %41 : vector<6x256xi1>, vector<6x256xf32>
    %46 = arith.select %10, %41, %42 : vector<6x256xi1>, vector<6x256xf32>
    %47 = arith.select %8, %44, %43 : vector<6x256xi1>, vector<6x256xf32>
    %48 = arith.select %10, %43, %44 : vector<6x256xi1>, vector<6x256xf32>
    %49 = arith.subf %45, %46 : vector<6x256xf32>
    %50 = arith.addf %47, %40 : vector<6x256xf32>
    %51 = arith.addf %50, %48 : vector<6x256xf32>
    %52 = arith.mulf %49, %49 : vector<6x256xf32>
    %53 = arith.mulf %51, %51 : vector<6x256xf32>
    %54 = arith.addf %52, %53 : vector<6x256xf32>
    %55 = arith.mulf %32, %54 : vector<6x256xf32>
    %56 = math.sqrt %55 : vector<6x256xf32>
    %cst = arith.constant 2.000000e+00 : f32
    %57 = vector.broadcast %cst : f32 to vector<6x256xf32>
    %58 = arith.mulf %57, %56 : vector<6x256xf32>
    %cst_14 = arith.constant 0.0235294122 : f32
    %59 = vector.broadcast %cst_14 : f32 to vector<6x256xf32>
    %60 = arith.addf %58, %59 : vector<6x256xf32>
    %61 = arith.addf %32, %54 : vector<6x256xf32>
    %cst_15 = arith.constant 0.0235294122 : f32
    %62 = vector.broadcast %cst_15 : f32 to vector<6x256xf32>
    %63 = arith.addf %61, %62 : vector<6x256xf32>
    %64 = arith.divf %60, %63 : vector<6x256xf32>
    %cst_16 = arith.constant 1.000000e+00 : f32
    %65 = vector.broadcast %cst_16 : f32 to vector<6x256xf32>
    %66 = arith.subf %65, %64 : vector<6x256xf32>
    %c0_17 = arith.constant 0 : index
    %c0_18 = arith.constant 0 : index
    %67 = vector.load %arg3[%c0_17, %c0_18] : memref<6x256xf32, #tpu.memory_space<vmem>>, vector<6x256xf32>
    tpu.vector_store %arg3[%c0_17, %c0_18], %66 {strides = array<i32>} : memref<6x256xf32, #tpu.memory_space<vmem>>, vector<6x256xf32>,
    return
  }
  func.func @transform_0(%arg0: i32) -> (i32, i32) {
    %c0_i32 = arith.constant 0 : i32
    %c0_i32_0 = arith.constant 0 : i32
    return %arg0, %c0_i32 : i32, i32
  }
  func.func @transform_1(%arg0: i32) -> (i32, i32) {
    %c0_i32 = arith.constant 0 : i32
    %c0_i32_0 = arith.constant 0 : i32
    return %arg0, %c0_i32 : i32, i32
  }
  func.func @transform_2(%arg0: i32) -> (i32, i32) {
    %c0_i32 = arith.constant 0 : i32
    %c0_i32_0 = arith.constant 0 : i32
    return %arg0, %c0_i32 : i32, i32
  }
}

</mosaic_0001>

<llo_original>
// kernel: tpu_custom_call.1
$region0: #{tpu_custom_call.1}
  #allocation0 [shape = 'u32[]', space=smem, size = 0x4, offset = 0x4, fixed_abs, tag = 'smem constant byte address 0x4 - core index']
  #allocation1 [shape = 'u32[72,128]{1,0:T(1,128)}', space=vmem, size = 0x9000, scoped, tag = 'internal scratch']
  %s0 = inlined_call_operand.hbm [shape: f32[6,256], index: 0, kind: input, shape index: {}]
  %s1 = inlined_call_operand.hbm [shape: f32[6,256], index: 1, kind: input, shape index: {}]
  %s2 = inlined_call_operand.hbm [shape: f32[6,256], index: 2, kind: output, shape index: {}]
  %s3 = sld [smem:[#allocation0]]
  $region26: #{tpu_custom_call.1} parent=0
    _
  %s5 = ssub.s32 1, %s3
  %s6 = scalar_select 0, %s5, %s3
  $region1: #{tpu_custom_call.1} parent=0
    #allocation2 [shape = 'u8[8192]{0}', space=vmem, size = 0x2000, scoped, tag = 'input window, operand 0, single buffered']
    #allocation3 [shape = 's32[1]{0}', space=sflag, size = 0x4, scoped, tag = 'scoped memory for tpu_custom_call.1']
    #allocation4 [shape = 's32[1]{0}', space=sflag, size = 0x4, scoped, tag = 'scoped memory for tpu_custom_call.1']
    #allocation5 [shape = 'u8[8192]{0}', space=vmem, size = 0x2000, scoped, tag = 'input window, operand 1, single buffered']
    #allocation6 [shape = 's32[1]{0}', space=sflag, size = 0x4, scoped, tag = 'scoped memory for tpu_custom_call.1']
    #allocation7 [shape = 'u8[8192]{0}', space=vmem, size = 0x2000, scoped, tag = 'output window, operand 0, single buffered']
    %7 = vsyncpa [#allocation3], 0
    %8 = vsyncpa [#allocation6], 0
    %9 = vsyncpa [#allocation4], 0
    // Predicated region
    $region2: #{tpu_custom_call.1} parent=1 // pred_check
      _
    $region3: #{tpu_custom_call.1} parent=1 // pred_check_branch
      %11 = sbr.rel (0) target = $region5
    $region4: #{tpu_custom_call.1} parent=1 // pred_region
      %13 = vsyncadd [#allocation3], 0
      %s15 = sshll.u32 %s0, 4
      %s16 = int_to_ptr.hbm [resolvable:$true] %s15
      %s17 = sshll.u32 [#allocation2], 4
      %s18 = int_to_ptr.vmem [resolvable:$true] %s17
      %20 = dma.hbm_to_vmem [thread:$0]  %s16, 256, %s18, [#allocation3]
    $region5: #{tpu_custom_call.1} parent=1 // pred_fallthru
      _
    // Predicated region
    $region6: #{tpu_custom_call.1} parent=1 // pred_check
      _
    $region7: #{tpu_custom_call.1} parent=1 // pred_check_branch
      %22 = sbr.rel (0) target = $region9
    $region8: #{tpu_custom_call.1} parent=1 // pred_region
      %24 = vsyncadd [#allocation6], 0
      %s26 = sshll.u32 %s1, 4
      %s27 = int_to_ptr.hbm [resolvable:$true] %s26
      %s28 = sshll.u32 [#allocation5], 4
      %s29 = int_to_ptr.vmem [resolvable:$true] %s28
      %31 = dma.hbm_to_vmem [thread:$0]  %s27, 256, %s29, [#allocation6]
    $region9: #{tpu_custom_call.1} parent=1 // pred_fallthru
      _
    // Predicated region
    $region10: #{tpu_custom_call.1} parent=1 // pred_check
      _
    $region11: #{tpu_custom_call.1} parent=1 // pred_check_branch
      %33 = sbr.rel (0) target = $region13
    $region12: #{tpu_custom_call.1} parent=1 // pred_region
      %35 = dma.done [#allocation3], 256
    $region13: #{tpu_custom_call.1} parent=1 // pred_fallthru
      _
    // Predicated region
    $region14: #{tpu_custom_call.1} parent=1 // pred_check
      _
    $region15: #{tpu_custom_call.1} parent=1 // pred_check_branch
      %37 = sbr.rel (0) target = $region17
    $region16: #{tpu_custom_call.1} parent=1 // pred_region
      %39 = dma.done [#allocation6], 256
    $region17: #{tpu_custom_call.1} parent=1 // pred_fallthru
      _
    %v40 = vlaneseq
    %v41 = vand.u32 %v40, 127
    %v42 = vadd.s32 %v41, 128
    %v43 = vand.u32 %v41, 15
    %v44 = vand.u32 %v42, 15
    %vm45 = vcmp.lt.s32.totalorder %v41, 16
    %vm46 = vcmp.lt.s32.totalorder %v42, 16
    %vm47 = vcmp.ge.s32.totalorder %v41, 240
    %vm48 = vcmp.ge.s32.totalorder %v42, 240
    %vm49 = vcmp.eq.s32.totalorder %v43, 0
    %vm50 = vcmp.eq.s32.totalorder %v44, 0
    %vm51 = vcmp.eq.s32.totalorder %v43, 15
    %vm52 = vcmp.eq.s32.totalorder %v44, 15
    %v53 = vld [vmem:[#allocation2] sm:$0x3f]
    %v54 = vld [vmem:[#allocation2 + $0x8] sm:$0x3f]
    %55 = vrot.lane.b32.xlu0 %v53, 16
    %v56 = vpop.permute.xlu0 %55
    %57 = vrot.lane.b32.xlu0 %v54, 16
    %v58 = vpop.permute.xlu0 %57
    %v59 = vsel %vm45, %v56, %v58
    %v60 = vsel %vm45, %v58, %v56
    %61 = vrot.lane.b32.xlu0 %v53, 112
    %v62 = vpop.permute.xlu0 %61
    %63 = vrot.lane.b32.xlu0 %v54, 112
    %v64 = vpop.permute.xlu0 %63
    %vm65 = vcmp.lt.s32.totalorder %v41, 112
    %v66 = vsel %vm65, %v62, %v64
    %v67 = vsel %vm65, %v64, %v62
    %v68 = vsel %vm45, %v66, %v60
    %v69 = vsel %vm46, %v67, %v59
    %v70 = vsel %vm47, %v60, %v66
    %v71 = vsel %vm48, %v59, %v67
    %v72 = vadd.f32 %v68, %v53
    %v73 = vadd.f32 %v69, %v54
    %v74 = vadd.f32 %v72, %v70
    %v75 = vadd.f32 %v73, %v71
    %v76 = vsub.f32 %v68, %v70
    %v77 = vsub.f32 %v69, %v71
    %78 = vrot.lane.b32.xlu0 %v74, 1
    %v79 = vpop.permute.xlu0 %78
    %80 = vrot.lane.b32.xlu0 %v75, 1
    %v81 = vpop.permute.xlu0 %80
    %vm82 = vcmp.lt.s32.totalorder %v41, 1
    %v83 = vsel %vm82, %v79, %v81
    %v84 = vsel %vm82, %v81, %v79
    %85 = vrot.lane.b32.xlu0 %v74, 127
    %v86 = vpop.permute.xlu0 %85
    %87 = vrot.lane.b32.xlu0 %v75, 127
    %v88 = vpop.permute.xlu0 %87
    %vm89 = vcmp.lt.s32.totalorder %v41, 127
    %v90 = vsel %vm89, %v86, %v88
    %v91 = vsel %vm89, %v88, %v86
    %92 = vrot.lane.b32.xlu0 %v76, 1
    %v93 = vpop.permute.xlu0 %92
    %94 = vrot.lane.b32.xlu0 %v77, 1
    %v95 = vpop.permute.xlu0 %94
    %v96 = vsel %vm82, %v93, %v95
    %v97 = vsel %vm82, %v95, %v93
    %98 = vrot.lane.b32.xlu0 %v76, 127
    %v99 = vpop.permute.xlu0 %98
    %100 = vrot.lane.b32.xlu0 %v77, 127
    %v101 = vpop.permute.xlu0 %100
    %v102 = vsel %vm89, %v99, %v101
    %v103 = vsel %vm89, %v101, %v99
    %v104 = vsel %vm49, %v90, %v84
    %v105 = vsel %vm50, %v91, %v83
    %v106 = vsel %vm51, %v84, %v90
    %v107 = vsel %vm52, %v83, %v91
    %v108 = vsel %vm49, %v102, %v97
    %v109 = vsel %vm50, %v103, %v96
    %v110 = vsel %vm51, %v97, %v102
    %v111 = vsel %vm52, %v96, %v103
    %v112 = vsub.f32 %v104, %v106
    %v113 = vsub.f32 %v105, %v107
    %v114 = vadd.f32 %v108, %v76
    %v115 = vadd.f32 %v109, %v77
    %v116 = vadd.f32 %v114, %v110
    %v117 = vadd.f32 %v115, %v111
    %v118 = vmul.f32 %v112, %v112
    %v119 = vmul.f32 %v113, %v113
    %v120 = vmul.f32 %v116, %v116
    %v121 = vmul.f32 %v117, %v117
    %v122 = vadd.f32 %v118, %v120
    %v123 = vadd.f32 %v119, %v121
    %v124 = vld [vmem:[#allocation5] sm:$0x3f]
    %v125 = vld [vmem:[#allocation5 + $0x8] sm:$0x3f]
    %126 = vrot.lane.b32.xlu0 %v124, 16
    %v127 = vpop.permute.xlu0 %126
    %128 = vrot.lane.b32.xlu0 %v125, 16
    %v129 = vpop.permute.xlu0 %128
    %v130 = vsel %vm45, %v127, %v129
    %v131 = vsel %vm45, %v129, %v127
    %132 = vrot.lane.b32.xlu0 %v124, 112
    %v133 = vpop.permute.xlu0 %132
    %134 = vrot.lane.b32.xlu0 %v125, 112
    %v135 = vpop.permute.xlu0 %134
    %v136 = vsel %vm65, %v133, %v135
    %v137 = vsel %vm65, %v135, %v133
    %v138 = vsel %vm45, %v136, %v131
    %v139 = vsel %vm46, %v137, %v130
    %v140 = vsel %vm47, %v131, %v136
    %v141 = vsel %vm48, %v130, %v137
    %v142 = vadd.f32 %v138, %v124
    %v143 = vadd.f32 %v139, %v125
    %v144 = vadd.f32 %v142, %v140
    %v145 = vadd.f32 %v143, %v141
    %v146 = vsub.f32 %v138, %v140
    %v147 = vsub.f32 %v139, %v141
    %148 = vrot.lane.b32.xlu0 %v144, 1
    %v149 = vpop.permute.xlu0 %148
    %150 = vrot.lane.b32.xlu0 %v145, 1
    %v151 = vpop.permute.xlu0 %150
    %v152 = vsel %vm82, %v149, %v151
    %v153 = vsel %vm82, %v151, %v149
    %154 = vrot.lane.b32.xlu0 %v144, 127
    %v155 = vpop.permute.xlu0 %154
    %156 = vrot.lane.b32.xlu0 %v145, 127
    %v157 = vpop.permute.xlu0 %156
    %v158 = vsel %vm89, %v155, %v157
    %v159 = vsel %vm89, %v157, %v155
    %160 = vrot.lane.b32.xlu0 %v146, 1
    %v161 = vpop.permute.xlu0 %160
    %162 = vrot.lane.b32.xlu0 %v147, 1
    %v163 = vpop.permute.xlu0 %162
    %v164 = vsel %vm82, %v161, %v163
    %v165 = vsel %vm82, %v163, %v161
    %166 = vrot.lane.b32.xlu0 %v146, 127
    %v167 = vpop.permute.xlu0 %166
    %168 = vrot.lane.b32.xlu0 %v147, 127
    %v169 = vpop.permute.xlu0 %168
    %v170 = vsel %vm89, %v167, %v169
    %v171 = vsel %vm89, %v169, %v167
    %v172 = vsel %vm49, %v158, %v153
    %v173 = vsel %vm50, %v159, %v152
    %v174 = vsel %vm51, %v153, %v158
    %v175 = vsel %vm52, %v152, %v159
    %v176 = vsel %vm49, %v170, %v165
    %v177 = vsel %vm50, %v171, %v164
    %v178 = vsel %vm51, %v165, %v170
    %v179 = vsel %vm52, %v164, %v171
    %v180 = vsub.f32 %v172, %v174
    %v181 = vsub.f32 %v173, %v175
    %v182 = vadd.f32 %v176, %v146
    %v183 = vadd.f32 %v177, %v147
    %v184 = vadd.f32 %v182, %v178
    %v185 = vadd.f32 %v183, %v179
    %v186 = vmul.f32 %v180, %v180
    %v187 = vmul.f32 %v181, %v181
    %v188 = vmul.f32 %v184, %v184
    %v189 = vmul.f32 %v185, %v185
    %v190 = vadd.f32 %v186, %v188
    %v191 = vadd.f32 %v187, %v189
    %v192 = vmul.f32 %v122, %v190
    %v193 = vmul.f32 %v123, %v191
    %v194 = vrsqrt.pop %v192
    %v195 = vmul.f32 %v194, %v192
    %v196 = vmul.f32 %v195, %v194
    %v197 = vmul.f32 0.5, %v196
    %v198 = vsub.f32 1.5, %v197
    %v199 = vmul.f32 %v194, %v198
    %v200 = vmul.f32 %v192, %v199
    %vm201 = vcmp.eq.f32.partialorder %v192, inf
    %v202 = vsel %vm201, %v192, %v200
    %vm203 = vcmp.eq.f32.partialorder %v192, 0.0
    %v204 = vand.u32 %v192, 2147483648
    %v205 = vsel %vm203, %v204, %v202
    %v206 = vrsqrt.pop %v193
    %v207 = vmul.f32 %v206, %v193
    %v208 = vmul.f32 %v207, %v206
    %v209 = vmul.f32 0.5, %v208
    %v210 = vsub.f32 1.5, %v209
    %v211 = vmul.f32 %v206, %v210
    %v212 = vmul.f32 %v193, %v211
    %vm213 = vcmp.eq.f32.partialorder %v193, inf
    %v214 = vsel %vm213, %v193, %v212
    %vm215 = vcmp.eq.f32.partialorder %v193, 0.0
    %v216 = vand.u32 %v193, 2147483648
    %v217 = vsel %vm215, %v216, %v214
    %v218 = vmul.f32 %v205, 2.0
    %v219 = vmul.f32 %v217, 2.0
    %v220 = vadd.f32 %v218, 0.023529412
    %v221 = vadd.f32 %v219, 0.023529412
    %v222 = vadd.f32 %v122, %v190
    %v223 = vadd.f32 %v123, %v191
    %v224 = vadd.f32 %v222, 0.023529412
    %v225 = vadd.f32 %v223, 0.023529412
    %v226 = vrcp.pop %v224
    %v227 = vmul.f32 %v224, %v226
    %v228 = vsub.f32 1.0, %v227
    %v229 = vmul.f32 %v226, %v228
    %v230 = vadd.f32 %v226, %v229
    %vm231 = vweird.f32 %v224
    %vm232 = vweird.f32 %v226
    %vm233 = vmor %vm231, %vm232
    %v234 = vsel %vm233, %v226, %v230
    %v235 = vand.u32 2147483647, %v224
    %vm236 = vcmp.eq.f32.partialorder %v235, 8.507059e+37
    %v237 = vand.u32 %v224, 2147483648
    %v238 = vor.u32 1.1754944e-38, %v237
    %v239 = vsel %vm236, %v238, %v234
    %v240 = vmul.f32 %v220, %v239
    %v241 = vrcp.pop %v225
    %v242 = vmul.f32 %v225, %v241
    %v243 = vsub.f32 1.0, %v242
    %v244 = vmul.f32 %v241, %v243
    %v245 = vadd.f32 %v241, %v244
    %vm246 = vweird.f32 %v225
    %vm247 = vweird.f32 %v241
    %vm248 = vmor %vm246, %vm247
    %v249 = vsel %vm248, %v241, %v245
    %v250 = vand.u32 2147483647, %v225
    %vm251 = vcmp.eq.f32.partialorder %v250, 8.507059e+37
    %v252 = vand.u32 %v225, 2147483648
    %v253 = vor.u32 1.1754944e-38, %v252
    %v254 = vsel %vm251, %v253, %v249
    %v255 = vmul.f32 %v221, %v254
    %v256 = vsub.f32 1.0, %v240
    %v257 = vsub.f32 1.0, %v255
    %258 = vst [vmem:[#allocation7] sm:$0x3f] %v256
    %259 = vst [vmem:[#allocation7 + $0x8] sm:$0x3f] %v257
    // Predicated region
    $region18: #{tpu_custom_call.1} parent=1 // pred_check
      _
    $region19: #{tpu_custom_call.1} parent=1 // pred_check_branch
      %261 = sbr.rel (0) target = $region21
    $region20: #{tpu_custom_call.1} parent=1 // pred_region
      %263 = vsyncadd [#allocation4], 0
      %s265 = sshll.u32 [#allocation7], 4
      %s266 = int_to_ptr.vmem [resolvable:$true] %s265
      %s267 = sshll.u32 %s2, 4
      %s268 = int_to_ptr.hbm [resolvable:$true] %s267
      %270 = dma.vmem_to_hbm [thread:$0]  %s266, 256, %s268, [#allocation4]
    $region21: #{tpu_custom_call.1} parent=1 // pred_fallthru
      _
    // Predicated region
    $region22: #{tpu_custom_call.1} parent=1 // pred_check
      _
    $region23: #{tpu_custom_call.1} parent=1 // pred_check_branch
      %272 = sbr.rel (0) target = $region25
    $region24: #{tpu_custom_call.1} parent=1 // pred_region
      %274 = dma.done [#allocation4], 256
    $region25: #{tpu_custom_call.1} parent=1 // pred_fallthru
      _
    %275 = vsyncpa [#allocation3], 1
    %276 = vsyncpa [#allocation6], 1
    %277 = vsyncpa [#allocation4], 1

</llo_original>
